<compile_context>
chip_gen: v5e
topology: v5e:2x2
jax: 0.10.0
libtpu: 0.0.40
codegen_flags: <defaults>
</compile_context>

<pallas_src>
import jax
import jax.numpy as jnp
from jax.experimental import pallas as pl
from jax.experimental.pallas import tpu as pltpu


_TARGET_TILE_BYTES = 8 * 1024 * 1024   # ~8 MiB per-step tile


def _gelu2_kernel(x_ref, o_ref):
    xf = x_ref[...].astype(jnp.float32)
    # sigmoid(1.702*x) == 0.5 * (1 + tanh(0.851*x)); tanh goes to the EUP slot
    # and avoids a VPU divide, so compute stays hidden under DMA even on v7x.
    sig = 0.5 * (1.0 + jnp.tanh(0.851 * xf))
    # Compute kept in f32 (kernel is memory-bound; bf16 VPU win is negligible).
    # TODO(synk): integer dtypes would truncate toward zero here; module is float-only.
    o_ref[...] = (xf * sig).astype(o_ref.dtype)


def _round_up(a, b):
    return -(-a // b) * b


def _row_align(itemsize):
    # sublane packing: f32 -> 8, bf16/f16 -> 16, int8/fp8 -> 32
    return max(8, 32 // max(1, itemsize))


def _vmem_cap_bytes():
    # Generation-aware budget: <= ~75% of physical VMEM
    # (v5e/v6e: 128 MiB -> 96 MiB; v7x: 64 MiB -> 48 MiB).
    try:
        phys = pltpu.get_tpu_info().vmem_capacity_bytes
    except Exception:
        phys = 64 << 20  # conservative (v7x) if the query is unavailable
    return max(16 << 20, (phys * 3) // 4)


def _divisor_cols(n):
    # Largest 128*2^k (<= 4096) dividing n; caller guarantees n % 128 == 0.
    c = 128
    while c * 2 <= 4096 and n % (c * 2) == 0:
        c *= 2
    return c


def _choose_blocks(rows, cols, itemsize, ralign, target_bytes):
    """Pick (block_rows, block_cols) for a (rows, cols) lane-dense view."""
    # Column blocking only for very wide 128-aligned rows; otherwise keep the
    # natural full row as the lane dimension (zero-copy, unmasked vst).
    if cols > 128 and cols % 128 == 0 and cols * itemsize * ralign > target_bytes:
        bc = max(128, (target_bytes // (ralign * itemsize)) // 128 * 128)
        bc = min(bc, cols)
    else:
        bc = cols
    br = max(ralign, (target_bytes // max(1, bc * itemsize)) // ralign * ralign)
    if br >= rows:
        if rows >= 2 * ralign and pl.cdiv(cols, bc) == 1:
            # Whole array would otherwise be one grid step: split rows ~in half
            # so both v7x TensorCores get work (harmless on v5e/v6e).
            br = _round_up(pl.cdiv(rows, 2), ralign)
        else:
            br = rows  # "equals full dim" is always legal
    return br, bc


def _run_2d(x2, br, bc, cap, donate):
    rows, cols = x2.shape
    itemsize = jnp.dtype(x2.dtype).itemsize
    tile_bytes = br * bc * itemsize
    # in + out, double-buffered = 4x tile; 5x for headroom, never above cap.
    vmem_limit = int(min(cap, max(32 << 20, 5 * tile_bytes)))
    grid = (pl.cdiv(rows, br), pl.cdiv(cols, bc))
    return pl.pallas_call(
        _gelu2_kernel,
        out_shape=jax.ShapeDtypeStruct((rows, cols), x2.dtype),
        grid_spec=pltpu.PrefetchScalarGridSpec(
            num_scalar_prefetch=0,
            grid=grid,
            in_specs=[pl.BlockSpec((br, bc), lambda i, j: (i, j))],
            out_specs=pl.BlockSpec((br, bc), lambda i, j: (i, j)),
        ),
        compiler_params=pltpu.CompilerParams(
            dimension_semantics=("parallel", "parallel"),
            vmem_limit_bytes=vmem_limit,
        ),
        input_output_aliases=({0: 0} if donate else {}),
    )(x2)


def gelu2(x, donate=False):
    """Elementwise GELU2 via a Pallas TPU kernel. Works for any input shape.

    Set donate=True only when the caller donates x (aliases the output onto
    the input buffer, halving HBM footprint for large activations).
    """
    orig_shape = x.shape
    n = x.size
    if n == 0:
        return x
    itemsize = jnp.dtype(x.dtype).itemsize
    ralign = _row_align(itemsize)
    H = orig_shape[-1] if len(orig_shape) >= 1 else n

    cap = _vmem_cap_bytes()
    # Clamp the tile target so 5x tile always fits the generation's VMEM cap.
    target = min(_TARGET_TILE_BYTES, max(1 << 20, cap // 5))

    # ---- zero-copy paths: find a lane-aligned 2-D view of the flat data ----
    if H % 128 == 0:
        cols = H                    # natural last dim (2-D column blocking
                                    # handles arbitrarily wide rows)
    elif n % 128 == 0:
        cols = _divisor_cols(n)     # repack flat data to 128*2^k lanes, no copy
    else:
        cols = 0                    # truly ragged -> pad path below

    if cols:
        rows = n // cols
        x2 = x.reshape(rows, cols)
        br, bc = _choose_blocks(rows, cols, itemsize, ralign, target)
        out = _run_2d(x2, br, bc, cap, donate)
        return out.reshape(orig_shape)

    # ---- ragged tail only: minimal pad (gelu2(0) == 0), then slice off ----
    cols = 128
    rows = pl.cdiv(n, cols)
    pad = rows * cols - n
    x_flat = jnp.pad(x.reshape(-1), (0, pad))
    x2 = x_flat.reshape(rows, cols)
    br, bc = _choose_blocks(rows, cols, itemsize, ralign, target)
    out = _run_2d(x2, br, bc, cap, donate=False)
    return out.reshape(-1)[:n].reshape(orig_shape)


if __name__ == "__main__":
    key = jax.random.PRNGKey(0)

    # (B, S, H) transformer-style activation; H=32 exercises the zero-copy
    # "repack to lane-dense" path (n % 128 == 0, no pad / no slice).
    x = jax.random.normal(key, (2, 8, 32), dtype=jnp.float32)
    y = gelu2(x)
    jax.block_until_ready(y)
    ref = x * jax.nn.sigmoid(1.702 * x)
    assert y.shape == x.shape and y.dtype == x.dtype
    assert jnp.allclose(y, ref, atol=1e-5, rtol=1e-5)

    # 128-aligned hidden dim (natural zero-copy path), bf16.
    xb = jax.random.normal(jax.random.PRNGKey(1), (2, 8, 128), dtype=jnp.bfloat16)
    yb = gelu2(xb)
    jax.block_until_ready(yb)
    xbf = xb.astype(jnp.float32)
    refb = (xbf * jax.nn.sigmoid(1.702 * xbf)).astype(jnp.bfloat16)
    assert yb.shape == xb.shape and yb.dtype == xb.dtype
    assert jnp.allclose(yb.astype(jnp.float32), refb.astype(jnp.float32),
                        atol=2e-2, rtol=2e-2)

    # Multi-step grid path (rows split across grid steps / v7x TensorCores).
    xl = jax.random.normal(jax.random.PRNGKey(2), (4, 128, 256), dtype=jnp.float32)
    yl = gelu2(xl)
    jax.block_until_ready(yl)
    refl = xl * jax.nn.sigmoid(1.702 * xl)
    assert jnp.allclose(yl, refl, atol=1e-5, rtol=1e-5)

    # Truly ragged size: only case that still uses the pad path.
    xr = jax.random.normal(jax.random.PRNGKey(3), (3, 5, 7), dtype=jnp.float32)
    yr = gelu2(xr)
    jax.block_until_ready(yr)
    refr = xr * jax.nn.sigmoid(1.702 * xr)
    assert yr.shape == xr.shape and yr.dtype == xr.dtype
    assert jnp.allclose(yr, refr, atol=1e-5, rtol=1e-5)

    print("KERNEL_OK")
</pallas_src>

<mosaic_0001>
module attributes {stable_mosaic.version = 11 : i64} {
  func.func @_gelu2_kernel(%arg0: i32, %arg1: i32, %arg2: memref<1x512xf32, #tpu.memory_space<vmem>>, %arg3: memref<1x512xf32, #tpu.memory_space<vmem>>) attributes {dimension_semantics = [#tpu.dimension_semantics<parallel>, #tpu.dimension_semantics<parallel>], iteration_bounds = array<i64: 1, 1>, scalar_prefetch = 0 : i64, scratch_operands = 0 : i64, tpu.core_type = #tpu.core_type<tc>, window_params = [{transform_indices = @transform_0, window_bounds = array<i64: 1, 512>}, {transform_indices = @transform_1, window_bounds = array<i64: 1, 512>}]} {
    %c0 = arith.constant 0 : index
    %c0_0 = arith.constant 0 : index
    %0 = vector.load %arg2[%c0, %c0_0] : memref<1x512xf32, #tpu.memory_space<vmem>>, vector<1x512xf32>
    %cst = arith.constant 8.510000e-01 : f32
    %1 = vector.broadcast %cst : f32 to vector<1x512xf32>
    %2 = arith.mulf %1, %0 : vector<1x512xf32>
    %3 = math.tanh %2 : vector<1x512xf32>
    %cst_1 = arith.constant 1.000000e+00 : f32
    %4 = vector.broadcast %cst_1 : f32 to vector<1x512xf32>
    %5 = arith.addf %4, %3 : vector<1x512xf32>
    %cst_2 = arith.constant 5.000000e-01 : f32
    %6 = vector.broadcast %cst_2 : f32 to vector<1x512xf32>
    %7 = arith.mulf %6, %5 : vector<1x512xf32>
    %8 = arith.mulf %0, %7 : vector<1x512xf32>
    %c0_3 = arith.constant 0 : index
    %c0_4 = arith.constant 0 : index
    %9 = vector.load %arg3[%c0_3, %c0_4] : memref<1x512xf32, #tpu.memory_space<vmem>>, vector<1x512xf32>
    tpu.vector_store %arg3[%c0_3, %c0_4], %8 {strides = array<i32>} : memref<1x512xf32, #tpu.memory_space<vmem>>, vector<1x512xf32>,
    return
  }
  func.func @transform_0(%arg0: i32, %arg1: i32) -> (i32, i32) {
    %c0_i32 = arith.constant 0 : i32
    return %arg0, %arg1 : i32, i32
  }
  func.func @transform_1(%arg0: i32, %arg1: i32) -> (i32, i32) {
    %c0_i32 = arith.constant 0 : i32
    return %arg0, %arg1 : i32, i32
  }
}

</mosaic_0001>

<llo_original>
// kernel: tpu_custom_call.1
$region0: #{tpu_custom_call.1}
  #allocation0 [shape = 'u32[]', space=smem, size = 0x4, offset = 0x4, fixed_abs, tag = 'smem constant byte address 0x4 - core index']
  #allocation1 [shape = 'u32[72,128]{1,0:T(1,128)}', space=vmem, size = 0x9000, scoped, tag = 'internal scratch']
  %s0 = inlined_call_operand.hbm [shape: f32[1,512], index: 0, kind: input, shape index: {}]
  %s1 = inlined_call_operand.hbm [shape: f32[1,512], index: 1, kind: output, shape index: {}]
  %s2 = sld [smem:[#allocation0]]
  $region18: #{tpu_custom_call.1} parent=0
    _
  %s4 = ssub.s32 1, %s2
  %s5 = scalar_select 0, %s4, %s2
  $region1: #{tpu_custom_call.1} parent=0
    #allocation2 [shape = 'u8[2048]{0}', space=vmem, size = 0x800, scoped, tag = 'input window, operand 0, single buffered']
    #allocation3 [shape = 's32[1]{0}', space=sflag, size = 0x4, scoped, tag = 'scoped memory for tpu_custom_call.1']
    #allocation4 [shape = 's32[1]{0}', space=sflag, size = 0x4, scoped, tag = 'scoped memory for tpu_custom_call.1']
    #allocation5 [shape = 'u8[2048]{0}', space=vmem, size = 0x800, scoped, tag = 'output window, operand 0, single buffered']
    %6 = vsyncpa [#allocation3], 0
    %7 = vsyncpa [#allocation4], 0
    // Predicated region
    $region2: #{tpu_custom_call.1} parent=1 // pred_check
      _
    $region3: #{tpu_custom_call.1} parent=1 // pred_check_branch
      %9 = sbr.rel (0) target = $region5
    $region4: #{tpu_custom_call.1} parent=1 // pred_region
      %11 = vsyncadd [#allocation3], 0
      %s13 = sshll.u32 %s0, 4
      %s14 = int_to_ptr.hbm [resolvable:$true] %s13
      %s15 = sshll.u32 [#allocation2], 4
      %s16 = int_to_ptr.vmem [resolvable:$true] %s15
      %18 = dma.hbm_to_vmem [thread:$0]  %s14, 64, %s16, [#allocation3]
    $region5: #{tpu_custom_call.1} parent=1 // pred_fallthru
      _
    // Predicated region
    $region6: #{tpu_custom_call.1} parent=1 // pred_check
      _
    $region7: #{tpu_custom_call.1} parent=1 // pred_check_branch
      %20 = sbr.rel (0) target = $region9
    $region8: #{tpu_custom_call.1} parent=1 // pred_region
      %22 = dma.done [#allocation3], 64
    $region9: #{tpu_custom_call.1} parent=1 // pred_fallthru
      _
    %v23 = vld [vmem:[#allocation2] sm:$0xf]
    %v24 = vmul.f32 %v23, 0.851
    %v25 = vtanh.pop %v24
    %v26 = vadd.f32 %v25, 1.0
    %v27 = vmul.f32 %v26, 0.5
    %v28 = vmul.f32 %v23, %v27
    %v29 = vlaneseq
    %vm30 = vcmp.ge.s32.totalorder %v29, 0
    %vm31 = vcmp.lt.s32.totalorder %v29, 512
    %vm32 = vmand %vm30, %vm31
    %33 = vst.msk [vmem:[#allocation5] sm:$0xf] %vm32, %v28
    // Predicated region
    $region10: #{tpu_custom_call.1} parent=1 // pred_check
      _
    $region11: #{tpu_custom_call.1} parent=1 // pred_check_branch
      %35 = sbr.rel (0) target = $region13
    $region12: #{tpu_custom_call.1} parent=1 // pred_region
      %37 = vsyncadd [#allocation4], 0
      %s39 = sshll.u32 [#allocation5], 4
      %s40 = int_to_ptr.vmem [resolvable:$true] %s39
      %s41 = sshll.u32 %s1, 4
      %s42 = int_to_ptr.hbm [resolvable:$true] %s41
      %44 = dma.vmem_to_hbm [thread:$0]  %s40, 64, %s42, [#allocation4]
    $region13: #{tpu_custom_call.1} parent=1 // pred_fallthru
      _
    // Predicated region
    $region14: #{tpu_custom_call.1} parent=1 // pred_check
      _
    $region15: #{tpu_custom_call.1} parent=1 // pred_check_branch
      %46 = sbr.rel (0) target = $region17
    $region16: #{tpu_custom_call.1} parent=1 // pred_region
      %48 = dma.done [#allocation4], 64
    $region17: #{tpu_custom_call.1} parent=1 // pred_fallthru
      _
    %49 = vsyncpa [#allocation3], 1
    %50 = vsyncpa [#allocation4], 1

</llo_original>
